<compile_context>
chip_gen: v7x
topology: tpu7x:2x2x1
jax: 0.10.0
libtpu: 0.0.40
codegen_flags: <defaults>
</compile_context>

<pallas_src>
import jax
import jax.numpy as jnp
from jax import lax
from jax.experimental import pallas as pl
from jax.experimental.pallas import tpu as pltpu

EPS = 1e-5  # nn.LayerNorm default


def _round_up(x, m):
    return ((x + m - 1) // m) * m


def _sublane(dtype):
    # 8 sublanes of 32-bit; sub-32-bit dtypes pack along sublanes.
    return max(8, 32 // jnp.dtype(dtype).itemsize)


def _vmem_cap_bytes():
    # Generation-aware cap: ~75% of physical VMEM per TensorCore
    # (~48 MiB on v7x, ~96 MiB on v5e/v6e). Conservative fallback if the
    # query is unavailable.
    phys = 64 << 20
    try:
        info = pltpu.get_tpu_info()
        cap = int(getattr(info, "vmem_capacity_bytes", 0))
        if cap > 0:
            phys = cap
    except Exception:
        pass
    return int(phys * 0.75)


def _layernorm_f32(x, gamma, beta):
    """Single-pass LayerNorm in f32 (biased variance, eps inside rsqrt)."""
    xf = x.astype(jnp.float32)
    d = xf.shape[-1]
    s1 = jnp.sum(xf, axis=-1, keepdims=True)
    s2 = jnp.sum(xf * xf, axis=-1, keepdims=True)
    mean = s1 * (1.0 / d)
    var = s2 * (1.0 / d) - mean * mean
    inv = lax.rsqrt(var + EPS)
    return (xf - mean) * inv * gamma.astype(jnp.float32) + beta.astype(jnp.float32)


# ----------------------------------------------------------------------------
# Kernel A: full weight resident in VMEM (DMA'd once; constant index_map).
# ----------------------------------------------------------------------------
def _prenorm_linear_resident_kernel(x_ref, g_ref, b_ref, w_ref, wb_ref, o_ref):
    """x_ref:(TM,D) g/b:(1,D) w_ref:(D,N) (in,out layout) wb:(1,N) o:(TM,N)."""
    y = _layernorm_f32(x_ref[...], g_ref[...], b_ref[...]).astype(w_ref.dtype)
    out = jnp.dot(y, w_ref[...], preferred_element_type=jnp.float32)
    o_ref[...] = (out + wb_ref[...].astype(jnp.float32)).astype(o_ref.dtype)


# ----------------------------------------------------------------------------
# Kernel B: streamed weight tiles; LayerNorm cached in VMEM scratch per row
# tile (computed at j == 0, reused across output-feature tiles).
# ----------------------------------------------------------------------------
def _prenorm_linear_streamed_kernel(x_ref, g_ref, b_ref, w_ref, wb_ref, o_ref,
                                    y_ref):
    """x:(TM,D) g/b:(1,D) w:(D,TN) (in,out layout) wb:(1,TN) o:(TM,TN)
    y_ref:(TM,D) VMEM scratch with normalized activations in weight dtype."""
    j = pl.program_id(1)

    @pl.when(j == 0)
    def _():
        y = _layernorm_f32(x_ref[...], g_ref[...], b_ref[...])
        y_ref[...] = y.astype(y_ref.dtype)

    out = jnp.dot(y_ref[...], w_ref[...], preferred_element_type=jnp.float32)
    o_ref[...] = (out + wb_ref[...].astype(jnp.float32)).astype(o_ref.dtype)


def prenorm_linear(x, gamma, beta, w, wb, *, tm=None, tn=None,
                   compute_dtype=None, force_streamed=False):
    """PreNorm(dim, fn=Linear(dim, out)) forward.

    x: (..., D);  gamma/beta: (D,);  w: (N, D) torch (out, in) layout;
    wb: (N,);  compute_dtype: optional MXU dtype for W / normalized acts
    (e.g. jnp.bfloat16).
    """
    orig_shape = x.shape
    D = orig_shape[-1]
    N = w.shape[0]
    rows = 1
    for s in orig_shape[:-1]:
        rows *= s
    x2 = x.reshape(rows, D)

    # One-time layout plumbing on static weights: torch (out,in) -> (in,out)
    # so the MXU RHS needs no in-kernel transpose; optional bf16 cast.
    wt = w.T
    if compute_dtype is not None:
        wt = wt.astype(compute_dtype)
    w_dtype = wt.dtype

    xb = jnp.dtype(x.dtype).itemsize
    wbyt = jnp.dtype(w_dtype).itemsize
    ob = jnp.dtype(x.dtype).itemsize
    sub = _sublane(x.dtype)
    cap = _vmem_cap_bytes()
    vec_bytes = 4 * (2 * D + N) * 4  # gamma / beta / linear-bias residents

    # ---- row-tile (tm) selection --------------------------------------
    if tm is None:
        tm = 1024 if rows >= 1024 else rows
    tm = max(sub, _round_up(min(tm, rows), sub))
    # Minimize padded rows: scan nearby multiples of the sublane count.
    best_tm, best_pad = tm, _round_up(rows, tm) - rows
    t = tm - sub
    while t >= max(sub, tm // 2) and best_pad > 0:
        pad = _round_up(rows, t) - rows
        if pad < best_pad:
            best_tm, best_pad = t, pad
        t -= sub
    tm = best_tm
    # v7x megacore: make sure the "parallel" row axis has >= 2 tiles.
    if _round_up(rows, tm) // tm == 1 and rows >= 2 * sub:
        tm = _round_up((rows + 1) // 2, sub)

    rows_p = _round_up(rows, tm)
    row_tiles = rows_p // tm
    x2p = x2 if rows_p == rows else jnp.pad(x2, ((0, rows_p - rows), (0, 0)))

    g2 = gamma.reshape(1, D)
    b2 = beta.reshape(1, D)
    wb2 = wb.reshape(1, N)

    # ---- choose resident vs streamed weight ----------------------------
    def resident_est(tm_):
        return (2 * tm_ * D * xb        # x tiles (double-buffered)
                + 2 * D * N * wbyt      # full weight (budget 2 buffers)
                + 2 * tm_ * N * ob      # output tiles
                + vec_bytes)

    use_resident = (not force_streamed) and resident_est(tm) <= cap

    if use_resident:
        est = resident_est(tm)
        vmem_limit = min(cap, max(int(est * 1.5), 32 << 20))
        out2 = pl.pallas_call(
            _prenorm_linear_resident_kernel,
            out_shape=jax.ShapeDtypeStruct((rows_p, N), x.dtype),
            grid=(row_tiles,),
            in_specs=[
                pl.BlockSpec((tm, D), lambda i: (i, 0)),   # x rows
                pl.BlockSpec((1, D), lambda i: (0, 0)),    # gamma (resident)
                pl.BlockSpec((1, D), lambda i: (0, 0)),    # beta  (resident)
                pl.BlockSpec((D, N), lambda i: (0, 0)),    # weight (DMA'd once)
                pl.BlockSpec((1, N), lambda i: (0, 0)),    # linear bias
            ],
            out_specs=pl.BlockSpec((tm, N), lambda i: (i, 0)),
            compiler_params=pltpu.CompilerParams(
                dimension_semantics=("parallel",),
                vmem_limit_bytes=vmem_limit),
        )(x2p, g2, b2, wt, wb2)
        return out2[:rows].reshape(orig_shape[:-1] + (N,))

    # ---- streamed fallback (large D*N) ----------------------------------
    # TODO(synk): a row-panel grid (reuse each weight tile across a panel of
    # row tiles) would cut weight HBM traffic further when D*N >> VMEM.
    if tn is None:
        tn = 512
    tn = min(tn, N)

    def pick_tn(target):
        # Largest multiple of 256 (128 fallback; full MXU columns on v6e/v7x)
        # that divides N and is <= target.
        for step in (256, 128):
            t_ = (min(target, N) // step) * step
            while t_ >= step:
                if N % t_ == 0:
                    return t_
                t_ -= step
        return N
    tn = pick_tn(tn)

    def streamed_est(tm_, tn_):
        return (2 * tm_ * D * xb        # x tiles
                + 2 * D * tn_ * wbyt    # weight tiles
                + 2 * tm_ * tn_ * ob    # output tiles
                + tm_ * D * wbyt        # y scratch
                + vec_bytes)

    # Shrink tiles (not just the limit) until we fit the VMEM cap.
    while streamed_est(tm, tn) > cap and tn > 256 and N % (tn // 2) == 0:
        tn //= 2
    while streamed_est(tm, tn) > cap and tm > 2 * sub:
        tm = max(sub, _round_up(tm // 2, sub))
    rows_p = _round_up(rows, tm)
    row_tiles = rows_p // tm
    x2p = x2 if rows_p == rows else jnp.pad(x2, ((0, rows_p - rows), (0, 0)))

    est = streamed_est(tm, tn)
    vmem_limit = min(cap, max(int(est * 1.5), 32 << 20))

    out2 = pl.pallas_call(
        _prenorm_linear_streamed_kernel,
        out_shape=jax.ShapeDtypeStruct((rows_p, N), x.dtype),
        grid=(row_tiles, N // tn),
        in_specs=[
            pl.BlockSpec((tm, D), lambda i, j: (i, 0)),    # x rows (reused over j)
            pl.BlockSpec((1, D), lambda i, j: (0, 0)),     # gamma
            pl.BlockSpec((1, D), lambda i, j: (0, 0)),     # beta
            pl.BlockSpec((D, tn), lambda i, j: (0, j)),    # weight tile (in,out)
            pl.BlockSpec((1, tn), lambda i, j: (0, j)),    # linear bias tile
        ],
        out_specs=pl.BlockSpec((tm, tn), lambda i, j: (i, j)),
        scratch_shapes=[pltpu.VMEM((tm, D), w_dtype)],
        compiler_params=pltpu.CompilerParams(
            dimension_semantics=("parallel", "arbitrary"),
            vmem_limit_bytes=vmem_limit),
    )(x2p, g2, b2, wt, wb2)
    return out2[:rows].reshape(orig_shape[:-1] + (N,))


def prenorm_linear_ref(x, gamma, beta, w, wb):
    """Pure-JAX reference for correctness checking."""
    xf = x.astype(jnp.float32)
    mean = jnp.mean(xf, axis=-1, keepdims=True)
    var = jnp.mean((xf - mean) ** 2, axis=-1, keepdims=True)
    y = (xf - mean) * lax.rsqrt(var + EPS) * gamma + beta
    return (y @ w.T.astype(jnp.float32) + wb.astype(jnp.float32)).astype(x.dtype)


if __name__ == "__main__":
    # TODO(synk): generic `fn` stays a Python callable in real use; here we
    # instantiate the common case fn = nn.Linear(dim, dim) and fuse it.
    key = jax.random.PRNGKey(0)
    B, S, D = 2, 72, 256  # rows=144 (non-power-of-two row count), D lane-dense
    k1, k2, k3, k4, k5 = jax.random.split(key, 5)

    x = jax.random.normal(k1, (B, S, D), dtype=jnp.float32)
    # LayerNorm params (torch init weight=1, bias=0; perturbed so the affine
    # part is exercised).
    gamma = jnp.ones((D,), jnp.float32) + 0.1 * jax.random.normal(k2, (D,))
    beta = 0.1 * jax.random.normal(k3, (D,))
    # fn = Linear(D, D) params, torch layout (out_features, in_features).
    w = 0.05 * jax.random.normal(k4, (D, D), dtype=jnp.float32)
    wb = 0.05 * jax.random.normal(k5, (D,), dtype=jnp.float32)

    ref = prenorm_linear_ref(x, gamma, beta, w, wb)

    # Fast path: full weight resident in VMEM, 1-D row grid.
    out = prenorm_linear(x, gamma, beta, w, wb)
    out = jax.block_until_ready(out)
    assert out.shape == (B, S, D)
    assert jnp.allclose(out, ref, atol=1e-3, rtol=1e-3), "resident path mismatch"

    # Fallback path: streamed weight tiles + y-scratch LN cache (exercised
    # here explicitly so both branches are validated on small shapes).
    out_s = prenorm_linear(x, gamma, beta, w, wb, tm=64, tn=128,
                           force_streamed=True)
    out_s = jax.block_until_ready(out_s)
    assert out_s.shape == (B, S, D)
    assert jnp.allclose(out_s, ref, atol=1e-3, rtol=1e-3), "streamed path mismatch"

    print("KERNEL_OK")
</pallas_src>

<mosaic_0001>
module attributes {stable_mosaic.version = 11 : i64} {
  func.func @_prenorm_linear_resident_kernel(%arg0: i32, %arg1: memref<72x256xf32, #tpu.memory_space<vmem>>, %arg2: memref<1x256xf32, #tpu.memory_space<vmem>>, %arg3: memref<1x256xf32, #tpu.memory_space<vmem>>, %arg4: memref<256x256xf32, #tpu.memory_space<vmem>>, %arg5: memref<1x256xf32, #tpu.memory_space<vmem>>, %arg6: memref<72x256xf32, #tpu.memory_space<vmem>>) attributes {dimension_semantics = [#tpu.dimension_semantics<parallel>], iteration_bounds = array<i64: 2>, scalar_prefetch = 0 : i64, scratch_operands = 0 : i64, tpu.core_type = #tpu.core_type<tc>, window_params = [{transform_indices = @transform_0, window_bounds = array<i64: 72, 256>}, {pipeline_mode = #tpu.pipeline_mode<synchronous>, transform_indices = @transform_1, window_bounds = array<i64: 1, 256>}, {pipeline_mode = #tpu.pipeline_mode<synchronous>, transform_indices = @transform_2, window_bounds = array<i64: 1, 256>}, {pipeline_mode = #tpu.pipeline_mode<synchronous>, transform_indices = @transform_3, window_bounds = array<i64: 256, 256>}, {pipeline_mode = #tpu.pipeline_mode<synchronous>, transform_indices = @transform_4, window_bounds = array<i64: 1, 256>}, {transform_indices = @transform_5, window_bounds = array<i64: 72, 256>}]} {
    %c0 = arith.constant 0 : index
    %c0_0 = arith.constant 0 : index
    %0 = vector.load %arg1[%c0, %c0_0] : memref<72x256xf32, #tpu.memory_space<vmem>>, vector<72x256xf32>
    %c0_1 = arith.constant 0 : index
    %c0_2 = arith.constant 0 : index
    %1 = vector.load %arg2[%c0_1, %c0_2] : memref<1x256xf32, #tpu.memory_space<vmem>>, vector<1x256xf32>
    %c0_3 = arith.constant 0 : index
    %c0_4 = arith.constant 0 : index
    %2 = vector.load %arg3[%c0_3, %c0_4] : memref<1x256xf32, #tpu.memory_space<vmem>>, vector<1x256xf32>
    %cst = arith.constant dense<0.000000e+00> : vector<72xf32>
    %3 = vector.multi_reduction <add>, %0, %cst [1] : vector<72x256xf32> to vector<72xf32>
    %4 = vector.shape_cast %3 : vector<72xf32> to vector<72x1xf32>
    %5 = arith.mulf %0, %0 : vector<72x256xf32>
    %cst_5 = arith.constant dense<0.000000e+00> : vector<72xf32>
    %6 = vector.multi_reduction <add>, %5, %cst_5 [1] : vector<72x256xf32> to vector<72xf32>
    %7 = vector.shape_cast %6 : vector<72xf32> to vector<72x1xf32>
    %cst_6 = arith.constant 3.906250e-03 : f32
    %8 = vector.broadcast %cst_6 : f32 to vector<72x1xf32>
    %9 = arith.mulf %4, %8 : vector<72x1xf32>
    %cst_7 = arith.constant 3.906250e-03 : f32
    %10 = vector.broadcast %cst_7 : f32 to vector<72x1xf32>
    %11 = arith.mulf %7, %10 : vector<72x1xf32>
    %12 = arith.mulf %9, %9 : vector<72x1xf32>
    %13 = arith.subf %11, %12 : vector<72x1xf32>
    %cst_8 = arith.constant 9.99999974E-6 : f32
    %14 = vector.broadcast %cst_8 : f32 to vector<72x1xf32>
    %15 = arith.addf %13, %14 : vector<72x1xf32>
    %16 = math.rsqrt %15 : vector<72x1xf32>
    %17 = vector.broadcast %9 : vector<72x1xf32> to vector<72x256xf32>
    %18 = arith.subf %0, %17 : vector<72x256xf32>
    %19 = vector.broadcast %16 : vector<72x1xf32> to vector<72x256xf32>
    %20 = arith.mulf %18, %19 : vector<72x256xf32>
    %21 = vector.broadcast %1 : vector<1x256xf32> to vector<72x256xf32>
    %22 = arith.mulf %20, %21 : vector<72x256xf32>
    %23 = vector.broadcast %2 : vector<1x256xf32> to vector<72x256xf32>
    %24 = arith.addf %22, %23 : vector<72x256xf32>
    %c0_9 = arith.constant 0 : index
    %c0_10 = arith.constant 0 : index
    %25 = vector.load %arg4[%c0_9, %c0_10] : memref<256x256xf32, #tpu.memory_space<vmem>>, vector<256x256xf32>
    %cst_11 = arith.constant dense<0.000000e+00> : vector<72x256xf32>
    %26 = tpu.matmul %24, %25, %cst_11 {dimension_numbers = #tpu.dot_dimension_numbers<[1], [0], [0], [1], [0, 0, 1, 1], [], []>} : vector<72x256xf32>, vector<256x256xf32>, vector<72x256xf32> -> vector<72x256xf32>
    %c0_12 = arith.constant 0 : index
    %c0_13 = arith.constant 0 : index
    %27 = vector.load %arg5[%c0_12, %c0_13] : memref<1x256xf32, #tpu.memory_space<vmem>>, vector<1x256xf32>
    %28 = vector.broadcast %27 : vector<1x256xf32> to vector<72x256xf32>
    %29 = arith.addf %26, %28 : vector<72x256xf32>
    %c0_14 = arith.constant 0 : index
    %c0_15 = arith.constant 0 : index
    %30 = vector.load %arg6[%c0_14, %c0_15] : memref<72x256xf32, #tpu.memory_space<vmem>>, vector<72x256xf32>
    tpu.vector_store %arg6[%c0_14, %c0_15], %29 {strides = array<i32>} : memref<72x256xf32, #tpu.memory_space<vmem>>, vector<72x256xf32>,
    return
  }
  func.func @transform_0(%arg0: i32) -> (i32, i32) {
    %c0_i32 = arith.constant 0 : i32
    %c0_i32_0 = arith.constant 0 : i32
    return %arg0, %c0_i32 : i32, i32
  }
  func.func @transform_1(%arg0: i32) -> (i32, i32) {
    %c0_i32 = arith.constant 0 : i32
    %c0_i32_0 = arith.constant 0 : i32
    %c0_i32_1 = arith.constant 0 : i32
    return %c0_i32, %c0_i32_0 : i32, i32
  }
  func.func @transform_2(%arg0: i32) -> (i32, i32) {
    %c0_i32 = arith.constant 0 : i32
    %c0_i32_0 = arith.constant 0 : i32
    %c0_i32_1 = arith.constant 0 : i32
    return %c0_i32, %c0_i32_0 : i32, i32
  }
  func.func @transform_3(%arg0: i32) -> (i32, i32) {
    %c0_i32 = arith.constant 0 : i32
    %c0_i32_0 = arith.constant 0 : i32
    %c0_i32_1 = arith.constant 0 : i32
    return %c0_i32, %c0_i32_0 : i32, i32
  }
  func.func @transform_4(%arg0: i32) -> (i32, i32) {
    %c0_i32 = arith.constant 0 : i32
    %c0_i32_0 = arith.constant 0 : i32
    %c0_i32_1 = arith.constant 0 : i32
    return %c0_i32, %c0_i32_0 : i32, i32
  }
  func.func @transform_5(%arg0: i32) -> (i32, i32) {
    %c0_i32 = arith.constant 0 : i32
    %c0_i32_0 = arith.constant 0 : i32
    return %arg0, %c0_i32 : i32, i32
  }
}

</mosaic_0001>

<llo_original>
// kernel: tpu_custom_call.1
$region0: #{tpu_custom_call.1}
  #allocation0 [shape = 'u32[]', space=smem, size = 0x4, offset = 0x4, fixed_abs, tag = 'smem constant byte address 0x4 - core index']
  #allocation1 [shape = 'u32[144,128]{1,0:T(1,128)}', space=vmem, size = 0x12000, scoped, tag = 'internal scratch']
  %s0 = inlined_call_operand.hbm [shape: f32[144,256], index: 0, kind: input, shape index: {}]
  %s1 = inlined_call_operand.vmem [shape: f32[1,256], index: 1, kind: input, shape index: {}]
  %s2 = inlined_call_operand.vmem [shape: f32[1,256], index: 2, kind: input, shape index: {}]
  %s3 = inlined_call_operand.hbm [shape: f32[256,256], index: 3, kind: input, shape index: {}]
  %s4 = inlined_call_operand.vmem [shape: f32[1,256], index: 4, kind: input, shape index: {}]
  %s5 = inlined_call_operand.hbm [shape: f32[144,256], index: 5, kind: output, shape index: {}]
  %s6 = sld [smem:[#allocation0]]
  $region61: #{tpu_custom_call.1} parent=0
    _
  %s8 = ssub.s32 1, %s6
  %s9 = scalar_select 0, %s8, %s6
  $region1: #{tpu_custom_call.1} parent=0
    #allocation2 [shape = 'u8[147456]{0}', space=vmem, size = 0x24000, scoped, tag = 'input window, operand 0']
    #allocation3 [shape = 's32[2]{0}', space=sflag, size = 0x8, scoped, tag = 'scoped memory for tpu_custom_call.1']
    #allocation4 [shape = 's32[2]{0}', space=sflag, size = 0x8, scoped, tag = 'scoped memory for tpu_custom_call.1']
    #allocation5 [shape = 'u8[262144]{0}', space=vmem, size = 0x40000, scoped, tag = 'input window, operand 3, single buffered']
    #allocation6 [shape = 's32[1]{0}', space=sflag, size = 0x4, scoped, tag = 'scoped memory for tpu_custom_call.1']
    #allocation7 [shape = 'u8[147456]{0}', space=vmem, size = 0x24000, scoped, tag = 'output window, operand 0']
    %10 = vsyncpa [#allocation3], 0
    %s11 = scalar_lea.sflag [#allocation3], 1
    %12 = vsyncpa %s11, 0
    %13 = vsyncpa [#allocation6], 0
    %14 = vsyncpa [#allocation4], 0
    %s15 = scalar_lea.sflag [#allocation4], 1
    %16 = vsyncpa %s15, 0
    loop: start=0, step=1, limit=4
    $region2: #{tpu_custom_call.1} parent=1 // loop_pre_header
      _
    $region3: #{tpu_custom_call.1} parent=1 // loop_header
      %s18 = sphi 0, %s22
      %p19 = scmp.ge.s32.totalorder %s18, 4
      %s28 = sphi 0, %s30
      %s31 = sphi 0, %s28
      %s32 = sphi 0, %s31
      %s48 = sphi 0, %s32
      %s52 = sphi 0, %s52
      %s54 = sphi 0, %s52
      %s55 = sphi 0, %s54
      %s69 = sphi 0, %s55
      %s73 = sphi 0, %s73
      %s75 = sphi 0, %s73
      %s76 = sphi 0, %s75
      %s90 = sphi 0, %s76
      %s94 = sphi 0, %s94
      %s96 = sphi 0, %s94
      %s97 = sphi 0, %s96
      %s111 = sphi 0, %s97
      %s115 = sphi 0, %s115
      %s117 = sphi 0, %s115
      %s118 = sphi 0, %s117
      %s132 = sphi 0, %s118
      %s138 = sphi 0, %s140
      %s141 = sphi 0, %s138
      %s142 = sphi 0, %s141
      %s158 = sphi 0, %s142
    $region4: #{tpu_custom_call.1} parent=1 // loop_header_branch
      %21 = sbr.rel (%p19) target = $region8
    $region5: #{tpu_custom_call.1} parent=1 // loop_body
      %s23 = ssub.s32 %s18, 1
      %s24 = ssub.s32 %s18, 2
      %s25 = sadd.s32 %s18, 1
      %s26 = ssub.s32 %s18, %s25
      %p27 = scmp.eq.s32.totalorder %s26, 0
      %s29 = sadd.s32 %s28, 1
      %s30 = scalar_select %p27, %s28, %s29
      %p33 = pneg %p27
      %p34 = scmp.eq.s32.totalorder %s18, 1
      %p35 = por %p33, %p34
      %p36 = scmp.ne.s32.totalorder %s28, %s31
      %p37 = scmp.eq.s32.totalorder %s18, 0
      %p38 = por %p36, %p37
      %p39 = scmp.ne.s32.totalorder %s28, %s31
      %p40 = scmp.eq.s32.totalorder %s23, 1
      %p41 = por %p39, %p40
      %p42 = scmp.ne.s32.totalorder %s31, %s32
      %p43 = scmp.eq.s32.totalorder %s23, 0
      %p44 = por %p42, %p43
      %p45 = scmp.ne.s32.totalorder %s31, %s32
      %p46 = scmp.eq.s32.totalorder %s24, 1
      %p47 = por %p45, %p46
      %p49 = scmp.ne.s32.totalorder %s32, %s48
      %p50 = scmp.eq.s32.totalorder %s24, 0
      %p51 = por %p49, %p50
      %s53 = sadd.s32 %s52, 1
      %p56 = scmp.eq.s32.totalorder %s18, 1
      %p57 = scmp.ne.s32.totalorder %s52, %s54
      %p58 = scmp.eq.s32.totalorder %s18, 0
      %p59 = por %p57, %p58
      %p60 = scmp.ne.s32.totalorder %s52, %s54
      %p61 = scmp.eq.s32.totalorder %s23, 1
      %p62 = por %p60, %p61
      %p63 = scmp.ne.s32.totalorder %s54, %s55
      %p64 = scmp.eq.s32.totalorder %s23, 0
      %p65 = por %p63, %p64
      %p66 = scmp.ne.s32.totalorder %s54, %s55
      %p67 = scmp.eq.s32.totalorder %s24, 1
      %p68 = por %p66, %p67
      %p70 = scmp.ne.s32.totalorder %s55, %s69
      %p71 = scmp.eq.s32.totalorder %s24, 0
      %p72 = por %p70, %p71
      %s74 = sadd.s32 %s73, 1
      %p77 = scmp.eq.s32.totalorder %s18, 1
      %p78 = scmp.ne.s32.totalorder %s73, %s75
      %p79 = scmp.eq.s32.totalorder %s18, 0
      %p80 = por %p78, %p79
      %p81 = scmp.ne.s32.totalorder %s73, %s75
      %p82 = scmp.eq.s32.totalorder %s23, 1
      %p83 = por %p81, %p82
      %p84 = scmp.ne.s32.totalorder %s75, %s76
      %p85 = scmp.eq.s32.totalorder %s23, 0
      %p86 = por %p84, %p85
      %p87 = scmp.ne.s32.totalorder %s75, %s76
      %p88 = scmp.eq.s32.totalorder %s24, 1
      %p89 = por %p87, %p88
      %p91 = scmp.ne.s32.totalorder %s76, %s90
      %p92 = scmp.eq.s32.totalorder %s24, 0
      %p93 = por %p91, %p92
      %s95 = sadd.s32 %s94, 1
      %p98 = scmp.eq.s32.totalorder %s18, 1
      %p99 = scmp.ne.s32.totalorder %s94, %s96
      %p100 = scmp.eq.s32.totalorder %s18, 0
      %p101 = por %p99, %p100
      %p102 = scmp.ne.s32.totalorder %s94, %s96
      %p103 = scmp.eq.s32.totalorder %s23, 1
      %p104 = por %p102, %p103
      %p105 = scmp.ne.s32.totalorder %s96, %s97
      %p106 = scmp.eq.s32.totalorder %s23, 0
      %p107 = por %p105, %p106
      %p108 = scmp.ne.s32.totalorder %s96, %s97
      %p109 = scmp.eq.s32.totalorder %s24, 1
      %p110 = por %p108, %p109
      %p112 = scmp.ne.s32.totalorder %s97, %s111
      %p113 = scmp.eq.s32.totalorder %s24, 0
      %p114 = por %p112, %p113
      %s116 = sadd.s32 %s115, 1
      %p119 = scmp.eq.s32.totalorder %s18, 1
      %p120 = scmp.ne.s32.totalorder %s115, %s117
      %p121 = scmp.eq.s32.totalorder %s18, 0
      %p122 = por %p120, %p121
      %p123 = scmp.ne.s32.totalorder %s115, %s117
      %p124 = scmp.eq.s32.totalorder %s23, 1
      %p125 = por %p123, %p124
      %p126 = scmp.ne.s32.totalorder %s117, %s118
      %p127 = scmp.eq.s32.totalorder %s23, 0
      %p128 = por %p126, %p127
      %p129 = scmp.ne.s32.totalorder %s117, %s118
      %p130 = scmp.eq.s32.totalorder %s24, 1
      %p131 = por %p129, %p130
      %p133 = scmp.ne.s32.totalorder %s118, %s132
      %p134 = scmp.eq.s32.totalorder %s24, 0
      %p135 = por %p133, %p134
      %s136 = ssub.s32 %s18, %s25
      %p137 = scmp.eq.s32.totalorder %s136, 0
      %s139 = sadd.s32 %s138, 1
      %s140 = scalar_select %p137, %s138, %s139
      %p143 = pneg %p137
      %p144 = scmp.eq.s32.totalorder %s18, 1
      %p145 = por %p143, %p144
      %p146 = scmp.ne.s32.totalorder %s138, %s141
      %p147 = scmp.eq.s32.totalorder %s18, 0
      %p148 = por %p146, %p147
      %p149 = scmp.ne.s32.totalorder %s138, %s141
      %p150 = scmp.eq.s32.totalorder %s23, 1
      %p151 = por %p149, %p150
      %p152 = scmp.ne.s32.totalorder %s141, %s142
      %p153 = scmp.eq.s32.totalorder %s23, 0
      %p154 = por %p152, %p153
      %p155 = scmp.ne.s32.totalorder %s141, %s142
      %p156 = scmp.eq.s32.totalorder %s24, 1
      %p157 = por %p155, %p156
      %p159 = scmp.ne.s32.totalorder %s142, %s158
      %p160 = scmp.eq.s32.totalorder %s24, 0
      %p161 = por %p159, %p160
      %p162 = scmp.le.s32.totalorder 1, %s18
      %p163 = scmp.lt.s32.totalorder %s18, 3
      %p164 = pnand %p162, %p163
      %p165 = pneg %p164
      // Predicated region
      $region9: #{tpu_custom_call.1} parent=5 // pred_check
        _
      $region10: #{tpu_custom_call.1} parent=5 // pred_check_branch
        %167 = sbr.rel (%p164) target = $region12
      $region11: #{tpu_custom_call.1} parent=5 // pred_region
        %s168 = ssub.s32 %s18, 1
        // Predicated region
        $region13: #{tpu_custom_call.1} parent=11 // pred_check
          %p169 = pneg %p65
        $region14: #{tpu_custom_call.1} parent=11 // pred_check_branch
          %171 = sbr.rel (%p169) target = $region16
        $region15: #{tpu_custom_call.1} parent=11 // pred_region
          _
        $region16: #{tpu_custom_call.1} parent=11 // pred_fallthru
          _
        // Predicated region
        $region17: #{tpu_custom_call.1} parent=11 // pred_check
          %p172 = pneg %p86
        $region18: #{tpu_custom_call.1} parent=11 // pred_check_branch
          %174 = sbr.rel (%p172) target = $region20
        $region19: #{tpu_custom_call.1} parent=11 // pred_region
          _
        $region20: #{tpu_custom_call.1} parent=11 // pred_fallthru
          _
        // Predicated region
        $region21: #{tpu_custom_call.1} parent=11 // pred_check
          %p175 = pneg %p107
        $region22: #{tpu_custom_call.1} parent=11 // pred_check_branch
          %177 = sbr.rel (%p175) target = $region24
        $region23: #{tpu_custom_call.1} parent=11 // pred_region
          %s179 = ssub.s32 8192, 8192
          %180 = vsyncadd [#allocation6], %s179
          %s181 = sshll.u32 [#allocation5], 4
          %s182 = int_to_ptr.vmem [resolvable:$true] %s181
          %187 = dma.hbm_to_vmem [thread:$0]  %s3, 8192, %s182, [#allocation6], 256, 256, 16
        $region24: #{tpu_custom_call.1} parent=11 // pred_fallthru
          _
        // Predicated region
        $region25: #{tpu_custom_call.1} parent=11 // pred_check
          %p188 = pneg %p128
        $region26: #{tpu_custom_call.1} parent=11 // pred_check_branch
          %190 = sbr.rel (%p188) target = $region28
        $region27: #{tpu_custom_call.1} parent=11 // pred_region
          _
        $region28: #{tpu_custom_call.1} parent=11 // pred_fallthru
          _
      $region12: #{tpu_custom_call.1} parent=5 // pred_fallthru
        _
      %p191 = scmp.lt.s32.totalorder %s18, 2
      // Predicated region
      $region29: #{tpu_custom_call.1} parent=5 // pred_check
        %p192 = pneg %p191
      $region30: #{tpu_custom_call.1} parent=5 // pred_check_branch
        %194 = sbr.rel (%p192) target = $region32
      $region31: #{tpu_custom_call.1} parent=5 // pred_region
        // Predicated region
        $region33: #{tpu_custom_call.1} parent=31 // pred_check
          %p195 = pneg %p38
        $region34: #{tpu_custom_call.1} parent=31 // pred_check_branch
          %197 = sbr.rel (%p195) target = $region36
        $region35: #{tpu_custom_call.1} parent=31 // pred_region
          %s198 = sand.u32 %s28, 1
          %s199 = scalar_lea.sflag [#allocation3], %s198
          %s200 = sand.u32 %s28, 1
          %s201 = smul.addr %s200, 144
          %s202 = scalar_lea.vmem [#allocation2], %s201
          %s203 = smul.u32 9, %s18
          %s205 = ssub.s32 2304, 2304
          %206 = vsyncadd %s199, %s205
          %s207 = smul.addr %s203, 2
          %s208 = smul.addr %s207, 128
          %s209 = scalar_lea.hbm %s0, %s208
          %s210 = sshll.u32 %s202, 4
          %s211 = int_to_ptr.vmem [resolvable:$true] %s210
          %216 = dma.hbm_to_vmem [thread:$0]  %s209, 2304, %s211, %s199, 256, 256, 16
        $region36: #{tpu_custom_call.1} parent=31 // pred_fallthru
          _
      $region32: #{tpu_custom_call.1} parent=5 // pred_fallthru
        _
      %p217 = scmp.le.s32.totalorder 1, %s18
      %p218 = scmp.lt.s32.totalorder %s18, 3
      %p219 = pnand %p217, %p218
      %p220 = pneg %p219
      // Predicated region
      $region37: #{tpu_custom_call.1} parent=5 // pred_check
        _
      $region38: #{tpu_custom_call.1} parent=5 // pred_check_branch
        %222 = sbr.rel (%p219) target = $region40
      $region39: #{tpu_custom_call.1} parent=5 // pred_region
        %s223 = ssub.s32 %s18, 1
        %s224 = sand.u32 %s31, 1
        %s225 = scalar_lea.sflag [#allocation3], %s224
        %s226 = sand.u32 %s31, 1
        %s227 = smul.addr %s226, 144
        %s228 = scalar_lea.vmem [#allocation2], %s227
        // Predicated region
        $region41: #{tpu_custom_call.1} parent=39 // pred_check
          %p229 = pneg %p44
        $region42: #{tpu_custom_call.1} parent=39 // pred_check_branch
          %231 = sbr.rel (%p229) target = $region44
        $region43: #{tpu_custom_call.1} parent=39 // pred_region
          %232 = dma.done %s225, 2304
        $region44: #{tpu_custom_call.1} parent=39 // pred_fallthru
          _
        // Predicated region
        $region45: #{tpu_custom_call.1} parent=39 // pred_check
          %p233 = pneg %p107
        $region46: #{tpu_custom_call.1} parent=39 // pred_check_branch
          %235 = sbr.rel (%p233) target = $region48
        $region47: #{tpu_custom_call.1} parent=39 // pred_region
          %236 = dma.done [#allocation6], 8192
        $region48: #{tpu_custom_call.1} parent=39 // pred_fallthru
          _
        %s237 = sand.u32 %s31, 1
        %s238 = scalar_lea.sflag [#allocation3], %s237
        %s239 = sand.u32 %s31, 1
        %s240 = smul.addr %s239, 144
        %s241 = scalar_lea.vmem [#allocation2], %s240
        %p242 = pneg %p44
        %p243 = pneg %p41
        %p244 = pneg %p65
        %p245 = pneg %p62
        %p246 = pneg %p86
        %p247 = pneg %p83
        %p248 = pneg %p107
        %p249 = pneg %p104
        %p250 = pneg %p128
        %p251 = pneg %p125
        %p252 = pneg %p154
        %p253 = pneg %p151
        %s254 = sand.u32 %s141, 1
        %s255 = scalar_lea.sflag [#allocation4], %s254
        %s256 = sand.u32 %s141, 1
        %s257 = smul.addr %s256, 144
        %s258 = scalar_lea.vmem [#allocation7], %s257
        %s259 = smul.u32 9, %s23
        %s260 = smul.u32 9, %s23
        %v261 = vld [vmem:[%s228] sm:$0xff]
        %v262 = vld [vmem:[%s228 + $0x8] sm:$0xff]
        %v263 = vld [vmem:[%s228 + $0x10] sm:$0xff]
        %v264 = vld [vmem:[%s228 + $0x18] sm:$0xff]
        %v265 = vld [vmem:[%s228 + $0x20] sm:$0xff]
        %v266 = vld [vmem:[%s228 + $0x28] sm:$0xff]
        %v267 = vld [vmem:[%s228 + $0x30] sm:$0xff]
        %v268 = vld [vmem:[%s228 + $0x38] sm:$0xff]
        %v269 = vld [vmem:[%s228 + $0x40] sm:$0xff]
        %v270 = vld [vmem:[%s228 + $0x48] sm:$0xff]
        %v271 = vld [vmem:[%s228 + $0x50] sm:$0xff]
        %v272 = vld [vmem:[%s228 + $0x58] sm:$0xff]
        %v273 = vld [vmem:[%s228 + $0x60] sm:$0xff]
        %v274 = vld [vmem:[%s228 + $0x68] sm:$0xff]
        %v275 = vld [vmem:[%s228 + $0x70] sm:$0xff]
        %v276 = vld [vmem:[%s228 + $0x78] sm:$0xff]
        %v277 = vld [vmem:[%s228 + $0x80] sm:$0xff]
        %v278 = vld [vmem:[%s228 + $0x88] sm:$0xff]
        %v279 = vld [vmem:[%s1] sm:$0x3]
        %v280 = vld [vmem:[%s2] sm:$0x3]
        %v281 = vadd.f32 %v261, %v262
        %282 = vadd.xlane.f32.xlu0 %v281
        %v283 = vpop.xlane.xlu0 %282
        %v284 = vadd.f32 %v263, %v264
        %285 = vadd.xlane.f32.xlu0 %v284
        %v286 = vpop.xlane.xlu0 %285
        %v287 = vadd.f32 %v265, %v266
        %288 = vadd.xlane.f32.xlu0 %v287
        %v289 = vpop.xlane.xlu0 %288
        %v290 = vadd.f32 %v267, %v268
        %291 = vadd.xlane.f32.xlu0 %v290
        %v292 = vpop.xlane.xlu0 %291
        %v293 = vadd.f32 %v269, %v270
        %294 = vadd.xlane.f32.xlu0 %v293
        %v295 = vpop.xlane.xlu0 %294
        %v296 = vadd.f32 %v271, %v272
        %297 = vadd.xlane.f32.xlu0 %v296
        %v298 = vpop.xlane.xlu0 %297
        %v299 = vadd.f32 %v273, %v274
        %300 = vadd.xlane.f32.xlu0 %v299
        %v301 = vpop.xlane.xlu0 %300
        %v302 = vadd.f32 %v275, %v276
        %303 = vadd.xlane.f32.xlu0 %v302
        %v304 = vpop.xlane.xlu0 %303
        %v305 = vadd.f32 %v277, %v278
        %306 = vadd.xlane.f32.xlu0 %v305
        %v307 = vpop.xlane.xlu0 %306
        %v308 = vmul.f32 %v261, %v261
        %v309 = vmul.f32 %v262, %v262
        %v310 = vmul.f32 %v263, %v263
        %v311 = vmul.f32 %v264, %v264
        %v312 = vmul.f32 %v265, %v265
        %v313 = vmul.f32 %v266, %v266
        %v314 = vmul.f32 %v267, %v267
        %v315 = vmul.f32 %v268, %v268
        %v316 = vmul.f32 %v269, %v269
        %v317 = vmul.f32 %v270, %v270
        %v318 = vmul.f32 %v271, %v271
        %v319 = vmul.f32 %v272, %v272
        %v320 = vmul.f32 %v273, %v273
        %v321 = vmul.f32 %v274, %v274
        %v322 = vmul.f32 %v275, %v275
        %v323 = vmul.f32 %v276, %v276
        %v324 = vmul.f32 %v277, %v277
        %v325 = vmul.f32 %v278, %v278
        %v326 = vadd.f32 %v308, %v309
        %327 = vadd.xlane.f32.xlu0 %v326
        %v328 = vpop.xlane.xlu0 %327
        %v329 = vadd.f32 %v310, %v311
        %330 = vadd.xlane.f32.xlu0 %v329
        %v331 = vpop.xlane.xlu0 %330
        %v332 = vadd.f32 %v312, %v313
        %333 = vadd.xlane.f32.xlu0 %v332
        %v334 = vpop.xlane.xlu0 %333
        %v335 = vadd.f32 %v314, %v315
        %336 = vadd.xlane.f32.xlu0 %v335
        %v337 = vpop.xlane.xlu0 %336
        %v338 = vadd.f32 %v316, %v317
        %339 = vadd.xlane.f32.xlu0 %v338
        %v340 = vpop.xlane.xlu0 %339
        %v341 = vadd.f32 %v318, %v319
        %342 = vadd.xlane.f32.xlu0 %v341
        %v343 = vpop.xlane.xlu0 %342
        %v344 = vadd.f32 %v320, %v321
        %345 = vadd.xlane.f32.xlu0 %v344
        %v346 = vpop.xlane.xlu0 %345
        %v347 = vadd.f32 %v322, %v323
        %348 = vadd.xlane.f32.xlu0 %v347
        %v349 = vpop.xlane.xlu0 %348
        %v350 = vadd.f32 %v324, %v325
        %351 = vadd.xlane.f32.xlu0 %v350
        %v352 = vpop.xlane.xlu0 %351
        %v353 = vmul.f32 %v283, 0.00390625
        %v354 = vmul.f32 %v286, 0.00390625
        %v355 = vmul.f32 %v289, 0.00390625
        %v356 = vmul.f32 %v292, 0.00390625
        %v357 = vmul.f32 %v295, 0.00390625
        %v358 = vmul.f32 %v298, 0.00390625
        %v359 = vmul.f32 %v301, 0.00390625
        %v360 = vmul.f32 %v304, 0.00390625
        %v361 = vmul.f32 %v307, 0.00390625
        %v362 = vmul.f32 %v328, 0.00390625
        %v363 = vmul.f32 %v331, 0.00390625
        %v364 = vmul.f32 %v334, 0.00390625
        %v365 = vmul.f32 %v337, 0.00390625
        %v366 = vmul.f32 %v340, 0.00390625
        %v367 = vmul.f32 %v343, 0.00390625
        %v368 = vmul.f32 %v346, 0.00390625
        %v369 = vmul.f32 %v349, 0.00390625
        %v370 = vmul.f32 %v352, 0.00390625
        %v371 = vmul.f32 %v353, %v353
        %v372 = vmul.f32 %v354, %v354
        %v373 = vmul.f32 %v355, %v355
        %v374 = vmul.f32 %v356, %v356
        %v375 = vmul.f32 %v357, %v357
        %v376 = vmul.f32 %v358, %v358
        %v377 = vmul.f32 %v359, %v359
        %v378 = vmul.f32 %v360, %v360
        %v379 = vmul.f32 %v361, %v361
        %v380 = vsub.f32 %v362, %v371
        %v381 = vsub.f32 %v363, %v372
        %v382 = vsub.f32 %v364, %v373
        %v383 = vsub.f32 %v365, %v374
        %v384 = vsub.f32 %v366, %v375
        %v385 = vsub.f32 %v367, %v376
        %v386 = vsub.f32 %v368, %v377
        %v387 = vsub.f32 %v369, %v378
        %v388 = vsub.f32 %v370, %v379
        %v389 = vadd.f32 %v380, 1e-05
        %v390 = vadd.f32 %v381, 1e-05
        %v391 = vadd.f32 %v382, 1e-05
        %v392 = vadd.f32 %v383, 1e-05
        %v393 = vadd.f32 %v384, 1e-05
        %v394 = vadd.f32 %v385, 1e-05
        %v395 = vadd.f32 %v386, 1e-05
        %v396 = vadd.f32 %v387, 1e-05
        %v397 = vadd.f32 %v388, 1e-05
        %v398 = vrsqrt.pop %v389
        %v399 = vrsqrt.pop %v390
        %v400 = vrsqrt.pop %v391
        %v401 = vrsqrt.pop %v392
        %v402 = vrsqrt.pop %v393
        %v403 = vrsqrt.pop %v394
        %v404 = vrsqrt.pop %v395
        %v405 = vrsqrt.pop %v396
        %v406 = vrsqrt.pop %v397
        %v407 = vsub.f32 %v261, %v353
        %v408 = vsub.f32 %v262, %v353
        %v409 = vsub.f32 %v263, %v354
        %v410 = vsub.f32 %v264, %v354
        %v411 = vsub.f32 %v265, %v355
        %v412 = vsub.f32 %v266, %v355
        %v413 = vsub.f32 %v267, %v356
        %v414 = vsub.f32 %v268, %v356
        %v415 = vsub.f32 %v269, %v357
        %v416 = vsub.f32 %v270, %v357
        %v417 = vsub.f32 %v271, %v358
        %v418 = vsub.f32 %v272, %v358
        %v419 = vsub.f32 %v273, %v359
        %v420 = vsub.f32 %v274, %v359
        %v421 = vsub.f32 %v275, %v360
        %v422 = vsub.f32 %v276, %v360
        %v423 = vsub.f32 %v277, %v361
        %v424 = vsub.f32 %v278, %v361
        %v425 = vmul.f32 %v407, %v398
        %v426 = vmul.f32 %v408, %v398
        %v427 = vmul.f32 %v409, %v399
        %v428 = vmul.f32 %v410, %v399
        %v429 = vmul.f32 %v411, %v400
        %v430 = vmul.f32 %v412, %v400
        %v431 = vmul.f32 %v413, %v401
        %v432 = vmul.f32 %v414, %v401
        %v433 = vmul.f32 %v415, %v402
        %v434 = vmul.f32 %v416, %v402
        %v435 = vmul.f32 %v417, %v403
        %v436 = vmul.f32 %v418, %v403
        %v437 = vmul.f32 %v419, %v404
        %v438 = vmul.f32 %v420, %v404
        %v439 = vmul.f32 %v421, %v405
        %v440 = vmul.f32 %v422, %v405
        %v441 = vmul.f32 %v423, %v406
        %v442 = vmul.f32 %v424, %v406
        %v444 = vlaneseq
        %v445 = vshrl.u32 %v444, 7
        %v446 = vsub.s32 0, %v445
        %v447 = vrot.slane %v279, %v446
        %v448 = vlaneseq
        %v449 = vshrl.u32 %v448, 7
        %v450 = vsub.s32 1, %v449
        %v451 = vrot.slane %v279, %v450
        %v454 = vmul.f32 %v425, %v447
        %v455 = vmul.f32 %v426, %v451
        %v456 = vmul.f32 %v427, %v447
        %v457 = vmul.f32 %v428, %v451
        %v458 = vmul.f32 %v429, %v447
        %v459 = vmul.f32 %v430, %v451
        %v460 = vmul.f32 %v431, %v447
        %v461 = vmul.f32 %v432, %v451
        %v462 = vmul.f32 %v433, %v447
        %v463 = vmul.f32 %v434, %v451
        %v464 = vmul.f32 %v435, %v447
        %v465 = vmul.f32 %v436, %v451
        %v466 = vmul.f32 %v437, %v447
        %v467 = vmul.f32 %v438, %v451
        %v468 = vmul.f32 %v439, %v447
        %v469 = vmul.f32 %v440, %v451
        %v470 = vmul.f32 %v441, %v447
        %v471 = vmul.f32 %v442, %v451
        %v473 = vlaneseq
        %v474 = vshrl.u32 %v473, 7
        %v475 = vsub.s32 0, %v474
        %v476 = vrot.slane %v280, %v475
        %v477 = vlaneseq
        %v478 = vshrl.u32 %v477, 7
        %v479 = vsub.s32 1, %v478
        %v480 = vrot.slane %v280, %v479
        %v483 = vadd.f32 %v454, %v476
        %v484 = vadd.f32 %v455, %v480
        %v485 = vadd.f32 %v456, %v476
        %v486 = vadd.f32 %v457, %v480
        %v487 = vadd.f32 %v458, %v476
        %v488 = vadd.f32 %v459, %v480
        %v489 = vadd.f32 %v460, %v476
        %v490 = vadd.f32 %v461, %v480
        %v491 = vadd.f32 %v462, %v476
        %v492 = vadd.f32 %v463, %v480
        %v493 = vadd.f32 %v464, %v476
        %v494 = vadd.f32 %v465, %v480
        %v495 = vadd.f32 %v466, %v476
        %v496 = vadd.f32 %v467, %v480
        %v497 = vadd.f32 %v468, %v476
        %v498 = vadd.f32 %v469, %v480
        %v499 = vadd.f32 %v470, %v476
        %v500 = vadd.f32 %v471, %v480
        %v501 = vld [vmem:[#allocation5] sm:$0xff]
        %v502 = vld [vmem:[#allocation5 + $0x8] sm:$0xff]
        %v503 = vld [vmem:[#allocation5 + $0x10] sm:$0xff]
        %v504 = vld [vmem:[#allocation5 + $0x18] sm:$0xff]
        %v505 = vld [vmem:[#allocation5 + $0x20] sm:$0xff]
        %v506 = vld [vmem:[#allocation5 + $0x28] sm:$0xff]
        %v507 = vld [vmem:[#allocation5 + $0x30] sm:$0xff]
        %v508 = vld [vmem:[#allocation5 + $0x38] sm:$0xff]
        %v509 = vld [vmem:[#allocation5 + $0x40] sm:$0xff]
        %v510 = vld [vmem:[#allocation5 + $0x48] sm:$0xff]
        %v511 = vld [vmem:[#allocation5 + $0x50] sm:$0xff]
        %v512 = vld [vmem:[#allocation5 + $0x58] sm:$0xff]
        %v513 = vld [vmem:[#allocation5 + $0x60] sm:$0xff]
        %v514 = vld [vmem:[#allocation5 + $0x68] sm:$0xff]
        %v515 = vld [vmem:[#allocation5 + $0x70] sm:$0xff]
        %v516 = vld [vmem:[#allocation5 + $0x78] sm:$0xff]
        %v517 = vld [vmem:[#allocation5 + $0x80] sm:$0xff]
        %v518 = vld [vmem:[#allocation5 + $0x88] sm:$0xff]
        %v519 = vld [vmem:[#allocation5 + $0x90] sm:$0xff]
        %v520 = vld [vmem:[#allocation5 + $0x98] sm:$0xff]
        %v521 = vld [vmem:[#allocation5 + $0xa0] sm:$0xff]
        %v522 = vld [vmem:[#allocation5 + $0xa8] sm:$0xff]
        %v523 = vld [vmem:[#allocation5 + $0xb0] sm:$0xff]
        %v524 = vld [vmem:[#allocation5 + $0xb8] sm:$0xff]
        %v525 = vld [vmem:[#allocation5 + $0xc0] sm:$0xff]
        %v526 = vld [vmem:[#allocation5 + $0xc8] sm:$0xff]
        %v527 = vld [vmem:[#allocation5 + $0xd0] sm:$0xff]
        %v528 = vld [vmem:[#allocation5 + $0xd8] sm:$0xff]
        %v529 = vld [vmem:[#allocation5 + $0xe0] sm:$0xff]
        %v530 = vld [vmem:[#allocation5 + $0xe8] sm:$0xff]
        %v531 = vld [vmem:[#allocation5 + $0xf0] sm:$0xff]
        %v532 = vld [vmem:[#allocation5 + $0xf8] sm:$0xff]
        %v533 = vld [vmem:[#allocation5 + $0x100] sm:$0xff]
        %v534 = vld [vmem:[#allocation5 + $0x108] sm:$0xff]
        %v535 = vld [vmem:[#allocation5 + $0x110] sm:$0xff]
        %v536 = vld [vmem:[#allocation5 + $0x118] sm:$0xff]
        %v537 = vld [vmem:[#allocation5 + $0x120] sm:$0xff]
        %v538 = vld [vmem:[#allocation5 + $0x128] sm:$0xff]
        %v539 = vld [vmem:[#allocation5 + $0x130] sm:$0xff]
        %v540 = vld [vmem:[#allocation5 + $0x138] sm:$0xff]
        %v541 = vld [vmem:[#allocation5 + $0x140] sm:$0xff]
        %v542 = vld [vmem:[#allocation5 + $0x148] sm:$0xff]
        %v543 = vld [vmem:[#allocation5 + $0x150] sm:$0xff]
        %v544 = vld [vmem:[#allocation5 + $0x158] sm:$0xff]
        %v545 = vld [vmem:[#allocation5 + $0x160] sm:$0xff]
        %v546 = vld [vmem:[#allocation5 + $0x168] sm:$0xff]
        %v547 = vld [vmem:[#allocation5 + $0x170] sm:$0xff]
        %v548 = vld [vmem:[#allocation5 + $0x178] sm:$0xff]
        %v549 = vld [vmem:[#allocation5 + $0x180] sm:$0xff]
        %v550 = vld [vmem:[#allocation5 + $0x188] sm:$0xff]
        %v551 = vld [vmem:[#allocation5 + $0x190] sm:$0xff]
        %v552 = vld [vmem:[#allocation5 + $0x198] sm:$0xff]
        %v553 = vld [vmem:[#allocation5 + $0x1a0] sm:$0xff]
        %v554 = vld [vmem:[#allocation5 + $0x1a8] sm:$0xff]
        %v555 = vld [vmem:[#allocation5 + $0x1b0] sm:$0xff]
        %v556 = vld [vmem:[#allocation5 + $0x1b8] sm:$0xff]
        %v557 = vld [vmem:[#allocation5 + $0x1c0] sm:$0xff]
        %v558 = vld [vmem:[#allocation5 + $0x1c8] sm:$0xff]
        %v559 = vld [vmem:[#allocation5 + $0x1d0] sm:$0xff]
        %v560 = vld [vmem:[#allocation5 + $0x1d8] sm:$0xff]
        %v561 = vld [vmem:[#allocation5 + $0x1e0] sm:$0xff]
        %v562 = vld [vmem:[#allocation5 + $0x1e8] sm:$0xff]
        %v563 = vld [vmem:[#allocation5 + $0x1f0] sm:$0xff]
        %v564 = vld [vmem:[#allocation5 + $0x1f8] sm:$0xff]
        %v565 = vld [vmem:[%s4] sm:$0x3]
        %v567 = vlaneseq
        %v568 = vshrl.u32 %v567, 7
        %v569 = vsub.s32 0, %v568
        %v570 = vrot.slane %v565, %v569
        %v571 = vlaneseq
        %v572 = vshrl.u32 %v571, 7
        %v573 = vsub.s32 1, %v572
        %v574 = vrot.slane %v565, %v573
        %577 = vmatprep.subr.mxu0 %v502
        %578 = vmatpush1.msra.mxu0 %v501
        %579 = vmatprep.subr.mxu0 %v504
        %580 = vmatpush1.msra.mxu0 %v503
        %581 = vmatprep.subr.mxu0 %v506
        %582 = vmatpush1.msra.mxu0 %v505
        %583 = vmatprep.subr.mxu0 %v508
        %584 = vmatpush1.msra.mxu0 %v507
        %585 = vmatprep.subr.mxu0 %v510
        %586 = vmatpush1.msra.mxu0 %v509
        %587 = vmatprep.subr.mxu0 %v512
        %588 = vmatpush1.msra.mxu0 %v511
        %589 = vmatprep.subr.mxu0 %v514
        %590 = vmatpush1.msra.mxu0 %v513
        %591 = vmatprep.subr.mxu0 %v516
        %592 = vmatpush1.msra.mxu0 %v515
        %593 = vmatprep.subr.mxu0 %v518
        %594 = vmatpush1.msra.mxu0 %v517
        %595 = vmatprep.subr.mxu0 %v520
        %596 = vmatpush1.msra.mxu0 %v519
        %597 = vmatprep.subr.mxu0 %v522
        %598 = vmatpush1.msra.mxu0 %v521
        %599 = vmatprep.subr.mxu0 %v524
        %600 = vmatpush1.msra.mxu0 %v523
        %601 = vmatprep.subr.mxu0 %v526
        %602 = vmatpush1.msra.mxu0 %v525
        %603 = vmatprep.subr.mxu0 %v528
        %604 = vmatpush1.msra.mxu0 %v527
        %605 = vmatprep.subr.mxu0 %v530
        %606 = vmatpush1.msra.mxu0 %v529
        %607 = vmatprep.subr.mxu0 %v532
        %608 = vmatpush1.msra.mxu0 %v531
        %609 = vmatprep.subr.mxu0 %v534
        %610 = vmatpush1.msra.mxu0 %v533
        %611 = vmatprep.subr.mxu0 %v536
        %612 = vmatpush1.msra.mxu0 %v535
        %613 = vmatprep.subr.mxu0 %v538
        %614 = vmatpush1.msra.mxu0 %v537
        %615 = vmatprep.subr.mxu0 %v540
        %616 = vmatpush1.msra.mxu0 %v539
        %617 = vmatprep.subr.mxu0 %v542
        %618 = vmatpush1.msra.mxu0 %v541
        %619 = vmatprep.subr.mxu0 %v544
        %620 = vmatpush1.msra.mxu0 %v543
        %621 = vmatprep.subr.mxu0 %v546
        %622 = vmatpush1.msra.mxu0 %v545
        %623 = vmatprep.subr.mxu0 %v548
        %624 = vmatpush1.msra.mxu0 %v547
        %625 = vmatprep.subr.mxu0 %v550
        %626 = vmatpush1.msra.mxu0 %v549
        %627 = vmatprep.subr.mxu0 %v552
        %628 = vmatpush1.msra.mxu0 %v551
        %629 = vmatprep.subr.mxu0 %v554
        %630 = vmatpush1.msra.mxu0 %v553
        %631 = vmatprep.subr.mxu0 %v556
        %632 = vmatpush1.msra.mxu0 %v555
        %633 = vmatprep.subr.mxu0 %v558
        %634 = vmatpush1.msra.mxu0 %v557
        %635 = vmatprep.subr.mxu0 %v560
        %636 = vmatpush1.msra.mxu0 %v559
        %637 = vmatprep.subr.mxu0 %v562
        %638 = vmatpush1.msra.mxu0 %v561
        %639 = vmatprep.subr.mxu0 %v564
        %640 = vmatpush1.msra.mxu0 %v563
        %641 = vmatprep.mubr.f32.mxu0 %v484
        %642 = vmatmul.mubr.f32.gmra.mrb[0].mxu0 %v483
        %v643 = vpop.f32.mrb[0].mxu0
        %v644 = vadd.f32 %v570, %v643
        %v645 = vpop.f32.mrb[0].mxu0
        %v646 = vadd.f32 %v574, %v645
        %647 = vmatprep.mubr.f32.mxu0 %v486
        %648 = vmatmul.mubr.f32.gmra.mrb[0].mxu0 %v485
        %v649 = vpop.f32.mrb[0].mxu0
        %v650 = vadd.f32 %v570, %v649
        %v651 = vpop.f32.mrb[0].mxu0
        %v652 = vadd.f32 %v574, %v651
        %653 = vmatprep.mubr.f32.mxu0 %v488
        %654 = vmatmul.mubr.f32.gmra.mrb[0].mxu0 %v487
        %v655 = vpop.f32.mrb[0].mxu0
        %v656 = vadd.f32 %v570, %v655
        %v657 = vpop.f32.mrb[0].mxu0
        %v658 = vadd.f32 %v574, %v657
        %659 = vmatprep.mubr.f32.mxu0 %v490
        %660 = vmatmul.mubr.f32.gmra.mrb[0].mxu0 %v489
        %v661 = vpop.f32.mrb[0].mxu0
        %v662 = vadd.f32 %v570, %v661
        %v663 = vpop.f32.mrb[0].mxu0
        %v664 = vadd.f32 %v574, %v663
        %665 = vmatprep.mubr.f32.mxu0 %v492
        %666 = vmatmul.mubr.f32.gmra.mrb[0].mxu0 %v491
        %v667 = vpop.f32.mrb[0].mxu0
        %v668 = vadd.f32 %v570, %v667
        %v669 = vpop.f32.mrb[0].mxu0
        %v670 = vadd.f32 %v574, %v669
        %671 = vmatprep.mubr.f32.mxu0 %v494
        %672 = vmatmul.mubr.f32.gmra.mrb[0].mxu0 %v493
        %v673 = vpop.f32.mrb[0].mxu0
        %v674 = vadd.f32 %v570, %v673
        %v675 = vpop.f32.mrb[0].mxu0
        %v676 = vadd.f32 %v574, %v675
        %677 = vmatprep.mubr.f32.mxu0 %v496
        %678 = vmatmul.mubr.f32.gmra.mrb[0].mxu0 %v495
        %v679 = vpop.f32.mrb[0].mxu0
        %v680 = vadd.f32 %v570, %v679
        %v681 = vpop.f32.mrb[0].mxu0
        %v682 = vadd.f32 %v574, %v681
        %683 = vmatprep.mubr.f32.mxu0 %v498
        %684 = vmatmul.mubr.f32.gmra.mrb[0].mxu0 %v497
        %v685 = vpop.f32.mrb[0].mxu0
        %v686 = vadd.f32 %v570, %v685
        %v687 = vpop.f32.mrb[0].mxu0
        %v688 = vadd.f32 %v574, %v687
        %689 = vmatprep.mubr.f32.mxu0 %v500
        %690 = vmatmul.mubr.f32.gmra.mrb[0].mxu0 %v499
        %v691 = vpop.f32.mrb[0].mxu0
        %v692 = vadd.f32 %v570, %v691
        %v693 = vpop.f32.mrb[0].mxu0
        %v694 = vadd.f32 %v574, %v693
        %695 = vdwg.mxu0
        %696 = vst [vmem:[%s258] sm:$0xff] %v644
        %697 = vst [vmem:[%s258 + $0x8] sm:$0xff] %v646
        %698 = vst [vmem:[%s258 + $0x10] sm:$0xff] %v650
        %699 = vst [vmem:[%s258 + $0x18] sm:$0xff] %v652
        %700 = vst [vmem:[%s258 + $0x20] sm:$0xff] %v656
        %701 = vst [vmem:[%s258 + $0x28] sm:$0xff] %v658
        %702 = vst [vmem:[%s258 + $0x30] sm:$0xff] %v662
        %703 = vst [vmem:[%s258 + $0x38] sm:$0xff] %v664
        %704 = vst [vmem:[%s258 + $0x40] sm:$0xff] %v668
        %705 = vst [vmem:[%s258 + $0x48] sm:$0xff] %v670
        %706 = vst [vmem:[%s258 + $0x50] sm:$0xff] %v674
        %707 = vst [vmem:[%s258 + $0x58] sm:$0xff] %v676
        %708 = vst [vmem:[%s258 + $0x60] sm:$0xff] %v680
        %709 = vst [vmem:[%s258 + $0x68] sm:$0xff] %v682
        %710 = vst [vmem:[%s258 + $0x70] sm:$0xff] %v686
        %711 = vst [vmem:[%s258 + $0x78] sm:$0xff] %v688
        %712 = vst [vmem:[%s258 + $0x80] sm:$0xff] %v692
        %713 = vst [vmem:[%s258 + $0x88] sm:$0xff] %v694
        %s714 = sand.u32 %s141, 1
        %s715 = scalar_lea.sflag [#allocation4], %s714
        %s716 = sand.u32 %s141, 1
        %s717 = smul.addr %s716, 144
        %s718 = scalar_lea.vmem [#allocation7], %s717
        // Predicated region
        $region49: #{tpu_custom_call.1} parent=39 // pred_check
          %p719 = pneg %p151
        $region50: #{tpu_custom_call.1} parent=39 // pred_check_branch
          %721 = sbr.rel (%p719) target = $region52
        $region51: #{tpu_custom_call.1} parent=39 // pred_region
          %s722 = smul.u32 9, %s23
          %s724 = ssub.s32 2304, 2304
          %725 = vsyncadd %s715, %s724
          %s726 = smul.addr %s722, 2
          %s727 = smul.addr %s726, 128
          %s728 = scalar_lea.hbm %s5, %s727
          %s729 = sshll.u32 %s718, 4
          %s730 = int_to_ptr.vmem [resolvable:$true] %s729
          %735 = dma.vmem_to_hbm [thread:$0]  %s730, 2304, %s728, %s715, 256, 256, 16
        $region52: #{tpu_custom_call.1} parent=39 // pred_fallthru
          _
      $region40: #{tpu_custom_call.1} parent=5 // pred_fallthru
        _
      %p736 = scmp.le.s32.totalorder 2, %s18
      // Predicated region
      $region53: #{tpu_custom_call.1} parent=5 // pred_check
        %p737 = pneg %p736
      $region54: #{tpu_custom_call.1} parent=5 // pred_check_branch
        %739 = sbr.rel (%p737) target = $region56
      $region55: #{tpu_custom_call.1} parent=5 // pred_region
        %s740 = ssub.s32 %s18, 2
        // Predicated region
        $region57: #{tpu_custom_call.1} parent=55 // pred_check
          %p741 = pneg %p157
        $region58: #{tpu_custom_call.1} parent=55 // pred_check_branch
          %743 = sbr.rel (%p741) target = $region60
        $region59: #{tpu_custom_call.1} parent=55 // pred_region
          %s744 = sand.u32 %s142, 1
          %s745 = scalar_lea.sflag [#allocation4], %s744
          %s746 = sand.u32 %s142, 1
          %s747 = smul.addr %s746, 144
          %s748 = scalar_lea.vmem [#allocation7], %s747
          %749 = dma.done %s745, 2304
        $region60: #{tpu_custom_call.1} parent=55 // pred_fallthru
          _
      $region56: #{tpu_custom_call.1} parent=5 // pred_fallthru
        _
    $region6: #{tpu_custom_call.1} parent=1 // loop_footer
      %s22 = sadd.s32 1, %s18
    $region7: #{tpu_custom_call.1} parent=1 // loop_footer_branch
      %17 = sbr.rel target = $region3
    $region8: #{tpu_custom_call.1} parent=1 // loop_exit
      _
    %750 = vsyncpa [#allocation3], 1
    %s751 = scalar_lea.sflag [#allocation3], 1
    %752 = vsyncpa %s751, 1
    %753 = vsyncpa [#allocation6], 1
    %754 = vsyncpa [#allocation4], 1
    %s755 = scalar_lea.sflag [#allocation4], 1
    %756 = vsyncpa %s755, 1

</llo_original>
